<compile_context>
chip_gen: v5e
topology: v5e:2x2
jax: 0.10.0
libtpu: 0.0.40
codegen_flags: <defaults>
</compile_context>

<pallas_src>
import math

import jax
import jax.numpy as jnp
from jax.experimental import pallas as pl
from jax.experimental.pallas import tpu as pltpu


def _round_up(a, b):
    return (a + b - 1) // b * b


def _pick_th(H, target=512):
    """Largest multiple of 128 that divides H, capped at `target`; else H."""
    best = 0
    cand = 128
    while cand <= min(target, H):
        if H % cand == 0:
            best = cand
        cand += 128
    return best if best else H


def _vmem_capacity_bytes():
    try:
        info = pltpu.get_tpu_info()
        cap = getattr(info, "vmem_capacity_bytes", None)
        if cap:
            return int(cap)
    except Exception:
        pass
    return 64 * 1024 * 1024  # conservative: v7x per-TensorCore VMEM


def _swiglu_kernel(x_ref, w1_ref, b1_ref, w2_ref, b2_ref, o_ref, *scratch):
    h_idx = pl.program_id(1)
    n_h = pl.num_programs(1)
    th = w1_ref.shape[1] // 2  # fused weight tile is (D_in, 2*th)

    x = x_ref[...]                                                     # (tm, D_in) bf16
    # single fused fc1 matmul on this H-slice: [gate | value]
    xw = jnp.dot(x, w1_ref[...], preferred_element_type=jnp.float32) + b1_ref[...]
    g = xw[:, :th]                                                     # gate  (tm, th) f32
    v = xw[:, th:]                                                     # value (tm, th) f32
    hidden = (g * jax.nn.sigmoid(g)) * v                               # SiLU(g)*v, f32
    # fc2 partial over this H-slice (f32 accumulation on the MXU)
    partial = jnp.dot(hidden.astype(w2_ref.dtype), w2_ref[...],
                      preferred_element_type=jnp.float32)              # (tm, D_out_p)

    if scratch:
        # non-f32 output: accumulate in an f32 VMEM scratch, cast at the end
        acc_ref = scratch[0]

        @pl.when(h_idx == 0)
        def _():
            acc_ref[...] = partial

        @pl.when(h_idx > 0)
        def _():
            acc_ref[...] += partial

        @pl.when(h_idx == n_h - 1)
        def _():
            o_ref[...] = (acc_ref[...] + b2_ref[...]).astype(o_ref.dtype)
    else:
        # f32 output: the resident output block is the accumulator (no scratch)
        @pl.when(h_idx == 0)
        def _():
            o_ref[...] = partial

        @pl.when(h_idx > 0)
        def _():
            o_ref[...] += partial

        @pl.when(h_idx == n_h - 1)
        def _():
            o_ref[...] += b2_ref[...]


def prepare_swiglu_params(w1g, b1g, w1x, b1x, w2, b2, *, th=None,
                          param_dtype=jnp.bfloat16):
    """One-time weight prep: pick th, interleave fc1_g/fc1_x per H-tile into a
    single weight, pad D_out to 128 lanes, cast weights to `param_dtype`.
    Weights are (in, out) = W.T of the PyTorch nn.Linear layout."""
    D_in, H = w1g.shape
    D_out = w2.shape[1]

    if th is None or not (th == H or (H % th == 0 and th % 128 == 0)):
        th = _pick_th(H)
    n_h = H // th

    # interleave per tile: columns [h*2th, h*2th+th) = gate tile h, then value tile h
    w1g_t = w1g.reshape(D_in, n_h, th)
    w1x_t = w1x.reshape(D_in, n_h, th)
    w1 = jnp.concatenate([w1g_t, w1x_t], axis=2).reshape(D_in, 2 * H)
    w1 = w1.astype(param_dtype)
    b1 = jnp.concatenate([b1g.reshape(n_h, th), b1x.reshape(n_h, th)],
                         axis=1).reshape(1, 2 * H).astype(jnp.float32)

    D_out_p = _round_up(D_out, 128)            # lane-dense output stores
    w2p, b2p = w2, b2
    if D_out_p != D_out:
        w2p = jnp.pad(w2, ((0, 0), (0, D_out_p - D_out)))
        b2p = jnp.pad(b2, (0, D_out_p - D_out))
    w2p = w2p.astype(param_dtype)
    b2p = b2p.reshape(1, D_out_p).astype(jnp.float32)

    return dict(w1=w1, b1=b1, w2=w2p, b2=b2p, th=th, n_h=n_h,
                D_in=D_in, H=H, D_out=D_out, D_out_p=D_out_p,
                dtype=param_dtype)


def swiglu(x, params, *, tm=512):
    """x: (..., D_in).  `params` from prepare_swiglu_params.  Output dtype = x.dtype."""
    orig_shape = x.shape
    out_dtype = x.dtype
    D_in = params["D_in"]
    H = params["H"]
    th, n_h = params["th"], params["n_h"]
    D_out, D_out_p = params["D_out"], params["D_out_p"]
    cdt = params["dtype"]

    M = math.prod(orig_shape[:-1]) if len(orig_shape) > 1 else 1
    x2 = x.reshape(M, D_in)
    if x2.dtype != cdt:
        x2 = x2.astype(cdt)

    # ---- token tile selection --------------------------------------------
    cdb = jnp.dtype(cdt).itemsize
    odb = jnp.dtype(out_dtype).itemsize
    align = 16 if cdb < 4 else 8               # bf16 packs 2 rows / sublane
    tm = _round_up(max(tm, align), align)
    tm = min(tm, _round_up(M, align))          # don't over-tile tiny inputs

    use_scratch = jnp.dtype(out_dtype) != jnp.dtype(jnp.float32)

    # ---- VMEM budget (from hardware) & cost estimate ----------------------
    budget = int(_vmem_capacity_bytes() * 0.9)

    def working_set(tm_):
        ws = 2 * (tm_ * D_in * cdb                      # x tile (double-buffered)
                  + D_in * 2 * th * cdb + 2 * th * 4    # fused w1 + b1 tiles
                  + th * D_out_p * cdb + D_out_p * 4    # w2 tile + b2
                  + tm_ * D_out_p * odb)                # out tile
        if use_scratch:
            ws += tm_ * D_out_p * 4                     # f32 accumulator
        return ws

    while working_set(tm) > budget and tm > align:
        tm = max(align, _round_up(tm // 2, align))
    vmem_limit = int(min(max(working_set(tm) * 5 // 4, 32 * 1024 * 1024), budget))

    cost = pl.CostEstimate(
        flops=2 * M * (2 * D_in * H + H * D_out_p),
        transcendentals=M * H,
        bytes_accessed=(M * D_in * cdb
                        + (params["w1"].size + params["w2"].size) * cdb
                        + (params["b1"].size + params["b2"].size) * 4
                        + M * D_out_p * odb),
    )

    grid = (pl.cdiv(M, tm), n_h)
    scratch_shapes = [pltpu.VMEM((tm, D_out_p), jnp.float32)] if use_scratch else []

    out = pl.pallas_call(
        _swiglu_kernel,
        out_shape=jax.ShapeDtypeStruct((M, D_out_p), out_dtype),
        grid_spec=pltpu.PrefetchScalarGridSpec(
            num_scalar_prefetch=0,
            grid=grid,
            in_specs=[
                pl.BlockSpec((tm, D_in), lambda i, h: (i, 0)),       # x tile
                pl.BlockSpec((D_in, 2 * th), lambda i, h: (0, h)),   # fused w1 tile
                pl.BlockSpec((1, 2 * th), lambda i, h: (0, h)),      # fused b1 tile
                pl.BlockSpec((th, D_out_p), lambda i, h: (h, 0)),    # w2 tile
                pl.BlockSpec((1, D_out_p), lambda i, h: (0, 0)),     # b2
            ],
            out_specs=pl.BlockSpec((tm, D_out_p), lambda i, h: (i, 0)),
            scratch_shapes=scratch_shapes,
        ),
        compiler_params=pltpu.CompilerParams(
            dimension_semantics=("parallel", "arbitrary"),
            vmem_limit_bytes=vmem_limit,
        ),
        cost_estimate=cost,
    )(x2, params["w1"], params["b1"], params["w2"], params["b2"])

    if D_out_p != D_out:
        out = out[:, :D_out]
    return out.reshape(*orig_shape[:-1], D_out)


if __name__ == "__main__":
    # Small shapes consistent with the module: batch=2, seq=8, in=32, hidden=256.
    B, S, D_IN = 2, 8, 32
    HID = 256
    D_OUT = D_IN

    key = jax.random.PRNGKey(0)
    kx, k1, k2, k3, k4, k5, k6 = jax.random.split(key, 7)

    x = jax.random.normal(kx, (B, S, D_IN), dtype=jnp.float32)

    # Weights stored as (in, out) = W.T of the PyTorch nn.Linear layout.
    w1g = jax.random.normal(k1, (D_IN, HID), dtype=jnp.float32) * 0.02
    b1g = jax.random.normal(k2, (HID,), dtype=jnp.float32) * 0.02
    w1x = jax.random.normal(k3, (D_IN, HID), dtype=jnp.float32) * 0.02
    b1x = jax.random.normal(k4, (HID,), dtype=jnp.float32) * 0.02
    w2 = jax.random.normal(k5, (HID, D_OUT), dtype=jnp.float32) * 0.02
    b2 = jax.random.normal(k6, (D_OUT,), dtype=jnp.float32) * 0.02

    # th=128 -> 2 hidden steps, exercising the H-tiled accumulation path.
    params = prepare_swiglu_params(w1g, b1g, w1x, b1x, w2, b2, th=128)

    # ---- reference with the same bf16 rounding the kernel applies ----------
    f32 = jnp.float32
    xb = x.astype(jnp.bfloat16).astype(f32)
    w1g_b = w1g.astype(jnp.bfloat16).astype(f32)
    w1x_b = w1x.astype(jnp.bfloat16).astype(f32)
    w2_b = w2.astype(jnp.bfloat16).astype(f32)
    g_ref = xb @ w1g_b + b1g
    v_ref = xb @ w1x_b + b1x
    h_ref = (g_ref * jax.nn.sigmoid(g_ref)) * v_ref
    ref = h_ref.astype(jnp.bfloat16).astype(f32) @ w2_b + b2

    # f32 input -> f32 output path (accumulates directly in the output block)
    out_f32 = jax.block_until_ready(swiglu(x, params))
    assert out_f32.shape == (B, S, D_OUT)
    assert jnp.allclose(out_f32, ref, atol=2e-3, rtol=2e-3), \
        float(jnp.max(jnp.abs(out_f32 - ref)))

    # bf16 input -> bf16 output path (f32 VMEM accumulator scratch)
    out_bf16 = jax.block_until_ready(swiglu(x.astype(jnp.bfloat16), params))
    assert out_bf16.shape == (B, S, D_OUT)
    assert out_bf16.dtype == jnp.bfloat16
    assert jnp.allclose(out_bf16.astype(f32), ref, atol=2e-2, rtol=2e-2)

    print("KERNEL_OK")
</pallas_src>

<mosaic_0001>
module attributes {stable_mosaic.version = 11 : i64} {
  func.func @_swiglu_kernel(%arg0: i32, %arg1: i32, %arg2: memref<16x32xbf16, #tpu.memory_space<vmem>>, %arg3: memref<32x256xbf16, #tpu.memory_space<vmem>>, %arg4: memref<1x256xf32, #tpu.memory_space<vmem>>, %arg5: memref<128x128xbf16, #tpu.memory_space<vmem>>, %arg6: memref<1x128xf32, #tpu.memory_space<vmem>>, %arg7: memref<16x128xf32, #tpu.memory_space<vmem>>) attributes {dimension_semantics = [#tpu.dimension_semantics<parallel>, #tpu.dimension_semantics<arbitrary>], iteration_bounds = array<i64: 1, 2>, scalar_prefetch = 0 : i64, scratch_operands = 0 : i64, tpu.core_type = #tpu.core_type<tc>, window_params = [{transform_indices = @transform_0, window_bounds = array<i64: 16, 32>}, {transform_indices = @transform_1, window_bounds = array<i64: 32, 256>}, {transform_indices = @transform_2, window_bounds = array<i64: 1, 256>}, {transform_indices = @transform_3, window_bounds = array<i64: 128, 128>}, {pipeline_mode = #tpu.pipeline_mode<synchronous>, transform_indices = @transform_4, window_bounds = array<i64: 1, 128>}, {transform_indices = @transform_5, window_bounds = array<i64: 16, 128>}]} {
    %c0 = arith.constant 0 : index
    %c0_0 = arith.constant 0 : index
    %0 = vector.load %arg2[%c0, %c0_0] : memref<16x32xbf16, #tpu.memory_space<vmem>>, vector<16x32xbf16>
    %c0_1 = arith.constant 0 : index
    %c0_2 = arith.constant 0 : index
    %1 = vector.load %arg3[%c0_1, %c0_2] : memref<32x256xbf16, #tpu.memory_space<vmem>>, vector<32x256xbf16>
    %cst = arith.constant dense<0.000000e+00> : vector<16x256xf32>
    %2 = tpu.matmul %0, %1, %cst {dimension_numbers = #tpu.dot_dimension_numbers<[1], [0], [0], [1], [0, 0, 1, 1], [], []>} : vector<16x32xbf16>, vector<32x256xbf16>, vector<16x256xf32> -> vector<16x256xf32>
    %c0_3 = arith.constant 0 : index
    %c0_4 = arith.constant 0 : index
    %3 = vector.load %arg4[%c0_3, %c0_4] : memref<1x256xf32, #tpu.memory_space<vmem>>, vector<1x256xf32>
    %4 = vector.broadcast %3 : vector<1x256xf32> to vector<16x256xf32>
    %5 = arith.addf %2, %4 : vector<16x256xf32>
    %6 = vector.extract_strided_slice %5 {offsets = [0, 0], sizes = [16, 128], strides = [1, 1]} : vector<16x256xf32> to vector<16x128xf32>
    %7 = vector.extract_strided_slice %5 {offsets = [0, 128], sizes = [16, 128], strides = [1, 1]} : vector<16x256xf32> to vector<16x128xf32>
    %8 = arith.negf %6 : vector<16x128xf32>
    %9 = math.exp %8 : vector<16x128xf32>
    %cst_5 = arith.constant 1.000000e+00 : f32
    %10 = vector.broadcast %cst_5 : f32 to vector<16x128xf32>
    %11 = arith.addf %10, %9 : vector<16x128xf32>
    %12 = arith.divf %10, %11 : vector<16x128xf32>
    %13 = arith.mulf %6, %12 : vector<16x128xf32>
    %14 = arith.mulf %13, %7 : vector<16x128xf32>
    %15 = arith.truncf %14 : vector<16x128xf32> to vector<16x128xbf16>
    %c0_6 = arith.constant 0 : index
    %c0_7 = arith.constant 0 : index
    %16 = vector.load %arg5[%c0_6, %c0_7] : memref<128x128xbf16, #tpu.memory_space<vmem>>, vector<128x128xbf16>
    %cst_8 = arith.constant dense<0.000000e+00> : vector<16x128xf32>
    %17 = tpu.matmul %15, %16, %cst_8 {dimension_numbers = #tpu.dot_dimension_numbers<[1], [0], [0], [1], [0, 0, 1, 1], [], []>} : vector<16x128xbf16>, vector<128x128xbf16>, vector<16x128xf32> -> vector<16x128xf32>
    %c0_i32 = arith.constant 0 : i32
    %18 = arith.cmpi eq, %arg1, %c0_i32 : i32
    %19 = arith.extui %18 : i1 to i32
    %c0_i32_9 = arith.constant 0 : i32
    %20 = arith.cmpi ne, %19, %c0_i32_9 : i32
    scf.if %20 {
      %c0_13 = arith.constant 0 : index
      %c0_14 = arith.constant 0 : index
      %27 = vector.load %arg7[%c0_13, %c0_14] : memref<16x128xf32, #tpu.memory_space<vmem>>, vector<16x128xf32>
      tpu.vector_store %arg7[%c0_13, %c0_14], %17 {strides = array<i32>} : memref<16x128xf32, #tpu.memory_space<vmem>>, vector<16x128xf32>,
    } else {
    }
    %c0_i32_10 = arith.constant 0 : i32
    %21 = arith.cmpi sgt, %arg1, %c0_i32_10 : i32
    %22 = arith.extui %21 : i1 to i32
    %c0_i32_11 = arith.constant 0 : i32
    %23 = arith.cmpi ne, %22, %c0_i32_11 : i32
    scf.if %23 {
      %c0_13 = arith.constant 0 : index
      %c0_14 = arith.constant 0 : index
      %27 = vector.load %arg7[%c0_13, %c0_14] : memref<16x128xf32, #tpu.memory_space<vmem>>, vector<16x128xf32>
      %28 = arith.addf %27, %17 : vector<16x128xf32>
      %c0_15 = arith.constant 0 : index
      %c0_16 = arith.constant 0 : index
      %29 = vector.load %arg7[%c0_15, %c0_16] : memref<16x128xf32, #tpu.memory_space<vmem>>, vector<16x128xf32>
      tpu.vector_store %arg7[%c0_15, %c0_16], %28 {strides = array<i32>} : memref<16x128xf32, #tpu.memory_space<vmem>>, vector<16x128xf32>,
    } else {
    }
    %c1_i32 = arith.constant 1 : i32
    %24 = arith.cmpi eq, %arg1, %c1_i32 : i32
    %25 = arith.extui %24 : i1 to i32
    %c0_i32_12 = arith.constant 0 : i32
    %26 = arith.cmpi ne, %25, %c0_i32_12 : i32
    scf.if %26 {
      %c0_13 = arith.constant 0 : index
      %c0_14 = arith.constant 0 : index
      %27 = vector.load %arg7[%c0_13, %c0_14] : memref<16x128xf32, #tpu.memory_space<vmem>>, vector<16x128xf32>
      %c0_15 = arith.constant 0 : index
      %c0_16 = arith.constant 0 : index
      %28 = vector.load %arg6[%c0_15, %c0_16] : memref<1x128xf32, #tpu.memory_space<vmem>>, vector<1x128xf32>
      %29 = vector.broadcast %28 : vector<1x128xf32> to vector<16x128xf32>
      %30 = arith.addf %27, %29 : vector<16x128xf32>
      %c0_17 = arith.constant 0 : index
      %c0_18 = arith.constant 0 : index
      %31 = vector.load %arg7[%c0_17, %c0_18] : memref<16x128xf32, #tpu.memory_space<vmem>>, vector<16x128xf32>
      tpu.vector_store %arg7[%c0_17, %c0_18], %30 {strides = array<i32>} : memref<16x128xf32, #tpu.memory_space<vmem>>, vector<16x128xf32>,
    } else {
    }
    return
  }
  func.func @transform_0(%arg0: i32, %arg1: i32) -> (i32, i32) {
    %c0_i32 = arith.constant 0 : i32
    %c0_i32_0 = arith.constant 0 : i32
    return %arg0, %c0_i32 : i32, i32
  }
  func.func @transform_1(%arg0: i32, %arg1: i32) -> (i32, i32) {
    %c0_i32 = arith.constant 0 : i32
    %c0_i32_0 = arith.constant 0 : i32
    return %c0_i32, %arg1 : i32, i32
  }
  func.func @transform_2(%arg0: i32, %arg1: i32) -> (i32, i32) {
    %c0_i32 = arith.constant 0 : i32
    %c0_i32_0 = arith.constant 0 : i32
    return %c0_i32, %arg1 : i32, i32
  }
  func.func @transform_3(%arg0: i32, %arg1: i32) -> (i32, i32) {
    %c0_i32 = arith.constant 0 : i32
    %c0_i32_0 = arith.constant 0 : i32
    return %arg1, %c0_i32 : i32, i32
  }
  func.func @transform_4(%arg0: i32, %arg1: i32) -> (i32, i32) {
    %c0_i32 = arith.constant 0 : i32
    %c0_i32_0 = arith.constant 0 : i32
    %c0_i32_1 = arith.constant 0 : i32
    return %c0_i32, %c0_i32_0 : i32, i32
  }
  func.func @transform_5(%arg0: i32, %arg1: i32) -> (i32, i32) {
    %c0_i32 = arith.constant 0 : i32
    %c0_i32_0 = arith.constant 0 : i32
    return %arg0, %c0_i32 : i32, i32
  }
}

</mosaic_0001>

<llo_original>
// kernel: tpu_custom_call.1
$region0: #{tpu_custom_call.1}
  #allocation0 [shape = 'u32[]', space=smem, size = 0x4, offset = 0x4, fixed_abs, tag = 'smem constant byte address 0x4 - core index']
  #allocation1 [shape = 'u32[72,128]{1,0:T(1,128)}', space=vmem, size = 0x9000, scoped, tag = 'internal scratch']
  %s0 = inlined_call_operand.hbm [shape: bf16[16,32], index: 0, kind: input, shape index: {}]
  %s1 = inlined_call_operand.hbm [shape: bf16[32,512], index: 1, kind: input, shape index: {}]
  %s2 = inlined_call_operand.hbm [shape: f32[1,512], index: 2, kind: input, shape index: {}]
  %s3 = inlined_call_operand.hbm [shape: bf16[256,128], index: 3, kind: input, shape index: {}]
  %s4 = inlined_call_operand.vmem [shape: f32[1,128], index: 4, kind: input, shape index: {}]
  %s5 = inlined_call_operand.hbm [shape: f32[16,128], index: 5, kind: output, shape index: {}]
  %s6 = sld [smem:[#allocation0]]
  $region81: #{tpu_custom_call.1} parent=0
    _
  %s8 = ssub.s32 1, %s6
  %s9 = scalar_select 0, %s8, %s6
  $region1: #{tpu_custom_call.1} parent=0
    #allocation2 [shape = 'u8[4096]{0}', space=vmem, size = 0x1000, scoped, tag = 'input window, operand 0, single buffered']
    #allocation3 [shape = 's32[2]{0}', space=sflag, size = 0x8, scoped, tag = 'scoped memory for tpu_custom_call.1']
    #allocation4 [shape = 's32[2]{0}', space=sflag, size = 0x8, scoped, tag = 'scoped memory for tpu_custom_call.1']
    #allocation5 [shape = 'u8[32768]{0}', space=vmem, size = 0x8000, scoped, tag = 'input window, operand 1']
    #allocation6 [shape = 's32[2]{0}', space=sflag, size = 0x8, scoped, tag = 'scoped memory for tpu_custom_call.1']
    #allocation7 [shape = 'u8[2048]{0}', space=vmem, size = 0x800, scoped, tag = 'input window, operand 2']
    #allocation8 [shape = 'u8[65536]{0}', space=vmem, size = 0x10000, scoped, tag = 'input window, operand 3']
    #allocation9 [shape = 's32[2]{0}', space=sflag, size = 0x8, scoped, tag = 'scoped memory for tpu_custom_call.1']
    #allocation10 [shape = 'u8[8192]{0}', space=vmem, size = 0x2000, scoped, tag = 'output window, operand 0, single buffered']
    %10 = vsyncpa [#allocation3], 0
    %11 = vsyncpa [#allocation6], 0
    %s12 = scalar_lea.sflag [#allocation6], 1
    %13 = vsyncpa %s12, 0
    %14 = vsyncpa [#allocation9], 0
    %s15 = scalar_lea.sflag [#allocation9], 1
    %16 = vsyncpa %s15, 0
    %17 = vsyncpa [#allocation4], 0
    loop: start=0, step=1, limit=4
    $region2: #{tpu_custom_call.1} parent=1 // loop_pre_header
      _
    $region3: #{tpu_custom_call.1} parent=1 // loop_header
      %s19 = sphi 0, %s23
      %p20 = scmp.ge.s32.totalorder %s19, 4
      %s26 = sphi 0, %s38
      %s27 = sphi 0, %s34
      %s28 = sphi 0, %s26
      %s29 = sphi 0, %s27
      %s30 = sphi 0, %s28
      %s31 = sphi 0, %s29
      %s41 = sphi 0, %s43
      %s44 = sphi 0, %s41
      %s45 = sphi 0, %s44
      %s61 = sphi 0, %s45
      %s67 = sphi 0, %s69
      %s70 = sphi 0, %s67
      %s71 = sphi 0, %s70
      %s87 = sphi 0, %s71
      %s93 = sphi 0, %s95
      %s96 = sphi 0, %s93
      %s97 = sphi 0, %s96
      %s113 = sphi 0, %s97
      %s119 = sphi 0, %s121
      %s122 = sphi 0, %s119
      %s123 = sphi 0, %s122
      %s139 = sphi 0, %s123
      %s143 = sphi 0, %s143
      %s145 = sphi 0, %s143
      %s146 = sphi 0, %s145
      %s160 = sphi 0, %s146
      %s166 = sphi 0, %s168
      %s169 = sphi 0, %s166
      %s170 = sphi 0, %s169
      %s186 = sphi 0, %s170
    $region4: #{tpu_custom_call.1} parent=1 // loop_header_branch
      %22 = sbr.rel (%p20) target = $region8
    $region5: #{tpu_custom_call.1} parent=1 // loop_body
      %s24 = ssub.s32 %s19, 1
      %s25 = ssub.s32 %s19, 2
      %s32 = sadd.s32 1, %s27
      %p33 = scmp.ge.s32.totalorder %s32, 2
      %s34 = scalar_select %p33, 0, %s32
      %s35 = sadd.s32 1, %s26
      %s36 = scalar_select %p33, %s35, %s26
      %p37 = scmp.ge.s32.totalorder %s36, 1
      %s38 = scalar_select %p37, 0, %s36
      %s39 = ssub.s32 %s26, %s38
      %p40 = scmp.eq.s32.totalorder %s39, 0
      %s42 = sadd.s32 %s41, 1
      %s43 = scalar_select %p40, %s41, %s42
      %p46 = pneg %p40
      %p47 = scmp.eq.s32.totalorder %s19, 1
      %p48 = por %p46, %p47
      %p49 = scmp.ne.s32.totalorder %s41, %s44
      %p50 = scmp.eq.s32.totalorder %s19, 0
      %p51 = por %p49, %p50
      %p52 = scmp.ne.s32.totalorder %s41, %s44
      %p53 = scmp.eq.s32.totalorder %s24, 1
      %p54 = por %p52, %p53
      %p55 = scmp.ne.s32.totalorder %s44, %s45
      %p56 = scmp.eq.s32.totalorder %s24, 0
      %p57 = por %p55, %p56
      %p58 = scmp.ne.s32.totalorder %s44, %s45
      %p59 = scmp.eq.s32.totalorder %s25, 1
      %p60 = por %p58, %p59
      %p62 = scmp.ne.s32.totalorder %s45, %s61
      %p63 = scmp.eq.s32.totalorder %s25, 0
      %p64 = por %p62, %p63
      %s65 = ssub.s32 %s27, %s34
      %p66 = scmp.eq.s32.totalorder %s65, 0
      %s68 = sadd.s32 %s67, 1
      %s69 = scalar_select %p66, %s67, %s68
      %p72 = pneg %p66
      %p73 = scmp.eq.s32.totalorder %s19, 1
      %p74 = por %p72, %p73
      %p75 = scmp.ne.s32.totalorder %s67, %s70
      %p76 = scmp.eq.s32.totalorder %s19, 0
      %p77 = por %p75, %p76
      %p78 = scmp.ne.s32.totalorder %s67, %s70
      %p79 = scmp.eq.s32.totalorder %s24, 1
      %p80 = por %p78, %p79
      %p81 = scmp.ne.s32.totalorder %s70, %s71
      %p82 = scmp.eq.s32.totalorder %s24, 0
      %p83 = por %p81, %p82
      %p84 = scmp.ne.s32.totalorder %s70, %s71
      %p85 = scmp.eq.s32.totalorder %s25, 1
      %p86 = por %p84, %p85
      %p88 = scmp.ne.s32.totalorder %s71, %s87
      %p89 = scmp.eq.s32.totalorder %s25, 0
      %p90 = por %p88, %p89
      %s91 = ssub.s32 %s27, %s34
      %p92 = scmp.eq.s32.totalorder %s91, 0
      %s94 = sadd.s32 %s93, 1
      %s95 = scalar_select %p92, %s93, %s94
      %p98 = pneg %p92
      %p99 = scmp.eq.s32.totalorder %s19, 1
      %p100 = por %p98, %p99
      %p101 = scmp.ne.s32.totalorder %s93, %s96
      %p102 = scmp.eq.s32.totalorder %s19, 0
      %p103 = por %p101, %p102
      %p104 = scmp.ne.s32.totalorder %s93, %s96
      %p105 = scmp.eq.s32.totalorder %s24, 1
      %p106 = por %p104, %p105
      %p107 = scmp.ne.s32.totalorder %s96, %s97
      %p108 = scmp.eq.s32.totalorder %s24, 0
      %p109 = por %p107, %p108
      %p110 = scmp.ne.s32.totalorder %s96, %s97
      %p111 = scmp.eq.s32.totalorder %s25, 1
      %p112 = por %p110, %p111
      %p114 = scmp.ne.s32.totalorder %s97, %s113
      %p115 = scmp.eq.s32.totalorder %s25, 0
      %p116 = por %p114, %p115
      %s117 = ssub.s32 %s27, %s34
      %p118 = scmp.eq.s32.totalorder %s117, 0
      %s120 = sadd.s32 %s119, 1
      %s121 = scalar_select %p118, %s119, %s120
      %p124 = pneg %p118
      %p125 = scmp.eq.s32.totalorder %s19, 1
      %p126 = por %p124, %p125
      %p127 = scmp.ne.s32.totalorder %s119, %s122
      %p128 = scmp.eq.s32.totalorder %s19, 0
      %p129 = por %p127, %p128
      %p130 = scmp.ne.s32.totalorder %s119, %s122
      %p131 = scmp.eq.s32.totalorder %s24, 1
      %p132 = por %p130, %p131
      %p133 = scmp.ne.s32.totalorder %s122, %s123
      %p134 = scmp.eq.s32.totalorder %s24, 0
      %p135 = por %p133, %p134
      %p136 = scmp.ne.s32.totalorder %s122, %s123
      %p137 = scmp.eq.s32.totalorder %s25, 1
      %p138 = por %p136, %p137
      %p140 = scmp.ne.s32.totalorder %s123, %s139
      %p141 = scmp.eq.s32.totalorder %s25, 0
      %p142 = por %p140, %p141
      %s144 = sadd.s32 %s143, 1
      %p147 = scmp.eq.s32.totalorder %s19, 1
      %p148 = scmp.ne.s32.totalorder %s143, %s145
      %p149 = scmp.eq.s32.totalorder %s19, 0
      %p150 = por %p148, %p149
      %p151 = scmp.ne.s32.totalorder %s143, %s145
      %p152 = scmp.eq.s32.totalorder %s24, 1
      %p153 = por %p151, %p152
      %p154 = scmp.ne.s32.totalorder %s145, %s146
      %p155 = scmp.eq.s32.totalorder %s24, 0
      %p156 = por %p154, %p155
      %p157 = scmp.ne.s32.totalorder %s145, %s146
      %p158 = scmp.eq.s32.totalorder %s25, 1
      %p159 = por %p157, %p158
      %p161 = scmp.ne.s32.totalorder %s146, %s160
      %p162 = scmp.eq.s32.totalorder %s25, 0
      %p163 = por %p161, %p162
      %s164 = ssub.s32 %s26, %s38
      %p165 = scmp.eq.s32.totalorder %s164, 0
      %s167 = sadd.s32 %s166, 1
      %s168 = scalar_select %p165, %s166, %s167
      %p171 = pneg %p165
      %p172 = scmp.eq.s32.totalorder %s19, 1
      %p173 = por %p171, %p172
      %p174 = scmp.ne.s32.totalorder %s166, %s169
      %p175 = scmp.eq.s32.totalorder %s19, 0
      %p176 = por %p174, %p175
      %p177 = scmp.ne.s32.totalorder %s166, %s169
      %p178 = scmp.eq.s32.totalorder %s24, 1
      %p179 = por %p177, %p178
      %p180 = scmp.ne.s32.totalorder %s169, %s170
      %p181 = scmp.eq.s32.totalorder %s24, 0
      %p182 = por %p180, %p181
      %p183 = scmp.ne.s32.totalorder %s169, %s170
      %p184 = scmp.eq.s32.totalorder %s25, 1
      %p185 = por %p183, %p184
      %p187 = scmp.ne.s32.totalorder %s170, %s186
      %p188 = scmp.eq.s32.totalorder %s25, 0
      %p189 = por %p187, %p188
      %p190 = scmp.le.s32.totalorder 1, %s19
      %p191 = scmp.lt.s32.totalorder %s19, 3
      %p192 = pnand %p190, %p191
      %p193 = pneg %p192
      // Predicated region
      $region9: #{tpu_custom_call.1} parent=5 // pred_check
        _
      $region10: #{tpu_custom_call.1} parent=5 // pred_check_branch
        %195 = sbr.rel (%p192) target = $region12
      $region11: #{tpu_custom_call.1} parent=5 // pred_region
        %s196 = ssub.s32 %s19, 1
        // Predicated region
        $region13: #{tpu_custom_call.1} parent=11 // pred_check
          %p197 = pneg %p57
        $region14: #{tpu_custom_call.1} parent=11 // pred_check_branch
          %199 = sbr.rel (%p197) target = $region16
        $region15: #{tpu_custom_call.1} parent=11 // pred_region
          %s200 = smul.u32 2, %s28
          %202 = vsyncadd [#allocation3], 0
          %s203 = smul.addr %s200, 4
          %s204 = scalar_lea.hbm %s0, %s203
          %s205 = sshll.u32 %s204, 4
          %s206 = int_to_ptr.hbm [resolvable:$true] %s205
          %s207 = sshll.u32 [#allocation2], 4
          %s208 = int_to_ptr.vmem [resolvable:$true] %s207
          %213 = dma.hbm_to_vmem [thread:$0]  %s206, 128, %s208, [#allocation3], 64, 64, 4
        $region16: #{tpu_custom_call.1} parent=11 // pred_fallthru
          _
        // Predicated region
        $region17: #{tpu_custom_call.1} parent=11 // pred_check
          %p214 = pneg %p156
        $region18: #{tpu_custom_call.1} parent=11 // pred_check_branch
          %216 = sbr.rel (%p214) target = $region20
        $region19: #{tpu_custom_call.1} parent=11 // pred_region
          _
        $region20: #{tpu_custom_call.1} parent=11 // pred_fallthru
          _
      $region12: #{tpu_custom_call.1} parent=5 // pred_fallthru
        _
      %p217 = scmp.lt.s32.totalorder %s19, 2
      // Predicated region
      $region21: #{tpu_custom_call.1} parent=5 // pred_check
        %p218 = pneg %p217
      $region22: #{tpu_custom_call.1} parent=5 // pred_check_branch
        %220 = sbr.rel (%p218) target = $region24
      $region23: #{tpu_custom_call.1} parent=5 // pred_region
        // Predicated region
        $region25: #{tpu_custom_call.1} parent=23 // pred_check
          %p221 = pneg %p77
        $region26: #{tpu_custom_call.1} parent=23 // pred_check_branch
          %223 = sbr.rel (%p221) target = $region28
        $region27: #{tpu_custom_call.1} parent=23 // pred_region
          %s224 = sand.u32 %s19, 1
          %s225 = scalar_lea.sflag [#allocation6], %s224
          %s226 = sand.u32 %s67, 1
          %s227 = smul.addr %s226, 32
          %s228 = scalar_lea.vmem [#allocation5], %s227
          %s229 = smul.u32 2, %s27
          %231 = vsyncadd %s225, 0
          %s232 = smul.addr %s229, 4
          %s233 = scalar_lea.hbm %s1, %s232
          %s234 = sshll.u32 %s233, 4
          %s235 = int_to_ptr.hbm [resolvable:$true] %s234
          %s236 = sshll.u32 %s228, 4
          %s237 = int_to_ptr.vmem [resolvable:$true] %s236
          %242 = dma.hbm_to_vmem [thread:$0]  %s235, 512, %s237, %s225, 256, 128, 8
        $region28: #{tpu_custom_call.1} parent=23 // pred_fallthru
          _
        // Predicated region
        $region29: #{tpu_custom_call.1} parent=23 // pred_check
          %p243 = pneg %p103
        $region30: #{tpu_custom_call.1} parent=23 // pred_check_branch
          %245 = sbr.rel (%p243) target = $region32
        $region31: #{tpu_custom_call.1} parent=23 // pred_region
          %s246 = sand.u32 %s19, 1
          %s247 = scalar_lea.sflag [#allocation6], %s246
          %s248 = sand.u32 %s93, 1
          %s249 = smul.addr %s248, 2
          %s250 = scalar_lea.vmem [#allocation7], %s249
          %s251 = smul.u32 2, %s27
          %253 = vsyncadd %s247, 0
          %s254 = scalar_lea.hbm %s2, %s251
          %s256 = sshll.u32 %s254, 4
          %s257 = int_to_ptr.hbm [resolvable:$true] %s256
          %s258 = sshll.u32 %s250, 4
          %s259 = int_to_ptr.vmem [resolvable:$true] %s258
          %261 = dma.hbm_to_vmem [thread:$0]  %s257, 32, %s259, %s247
        $region32: #{tpu_custom_call.1} parent=23 // pred_fallthru
          _
        // Predicated region
        $region33: #{tpu_custom_call.1} parent=23 // pred_check
          %p262 = pneg %p129
        $region34: #{tpu_custom_call.1} parent=23 // pred_check_branch
          %264 = sbr.rel (%p262) target = $region36
        $region35: #{tpu_custom_call.1} parent=23 // pred_region
          %s265 = sand.u32 %s119, 1
          %s266 = scalar_lea.sflag [#allocation9], %s265
          %s267 = sand.u32 %s119, 1
          %s268 = smul.addr %s267, 64
          %s269 = scalar_lea.vmem [#allocation8], %s268
          %s270 = smul.u32 16, %s27
          %272 = vsyncadd %s266, 0
          %s273 = smul.addr %s270, 4
          %s274 = scalar_lea.hbm %s3, %s273
          %s275 = sshll.u32 %s274, 4
          %s276 = int_to_ptr.hbm [resolvable:$true] %s275
          %s277 = sshll.u32 %s269, 4
          %s278 = int_to_ptr.vmem [resolvable:$true] %s277
          %283 = dma.hbm_to_vmem [thread:$0]  %s276, 1024, %s278, %s266, 64, 64, 4
        $region36: #{tpu_custom_call.1} parent=23 // pred_fallthru
          _
      $region24: #{tpu_custom_call.1} parent=5 // pred_fallthru
        _
      %p284 = scmp.le.s32.totalorder 1, %s19
      %p285 = scmp.lt.s32.totalorder %s19, 3
      %p286 = pnand %p284, %p285
      %p287 = pneg %p286
      // Predicated region
      $region37: #{tpu_custom_call.1} parent=5 // pred_check
        _
      $region38: #{tpu_custom_call.1} parent=5 // pred_check_branch
        %289 = sbr.rel (%p286) target = $region40
      $region39: #{tpu_custom_call.1} parent=5 // pred_region
        %s290 = ssub.s32 %s19, 1
        // Predicated region
        $region41: #{tpu_custom_call.1} parent=39 // pred_check
          %p291 = pneg %p57
        $region42: #{tpu_custom_call.1} parent=39 // pred_check_branch
          %293 = sbr.rel (%p291) target = $region44
        $region43: #{tpu_custom_call.1} parent=39 // pred_region
          %295 = dma.done [#allocation3], 128
        $region44: #{tpu_custom_call.1} parent=39 // pred_fallthru
          _
        %s296 = sand.u32 %s24, 1
        %s297 = scalar_lea.sflag [#allocation6], %s296
        %s298 = sand.u32 %s70, 1
        %s299 = smul.addr %s298, 32
        %s300 = scalar_lea.vmem [#allocation5], %s299
        // Predicated region
        $region45: #{tpu_custom_call.1} parent=39 // pred_check
          %p301 = pneg %p83
        $region46: #{tpu_custom_call.1} parent=39 // pred_check_branch
          %303 = sbr.rel (%p301) target = $region48
        $region47: #{tpu_custom_call.1} parent=39 // pred_region
          %305 = dma.done %s297, 512
        $region48: #{tpu_custom_call.1} parent=39 // pred_fallthru
          _
        %s306 = sand.u32 %s24, 1
        %s307 = scalar_lea.sflag [#allocation6], %s306
        %s308 = sand.u32 %s96, 1
        %s309 = smul.addr %s308, 2
        %s310 = scalar_lea.vmem [#allocation7], %s309
        // Predicated region
        $region49: #{tpu_custom_call.1} parent=39 // pred_check
          %p311 = pneg %p109
        $region50: #{tpu_custom_call.1} parent=39 // pred_check_branch
          %313 = sbr.rel (%p311) target = $region52
        $region51: #{tpu_custom_call.1} parent=39 // pred_region
          %315 = dma.done %s307, 32
        $region52: #{tpu_custom_call.1} parent=39 // pred_fallthru
          _
        %s316 = sand.u32 %s122, 1
        %s317 = scalar_lea.sflag [#allocation9], %s316
        %s318 = sand.u32 %s122, 1
        %s319 = smul.addr %s318, 64
        %s320 = scalar_lea.vmem [#allocation8], %s319
        // Predicated region
        $region53: #{tpu_custom_call.1} parent=39 // pred_check
          %p321 = pneg %p135
        $region54: #{tpu_custom_call.1} parent=39 // pred_check_branch
          %323 = sbr.rel (%p321) target = $region56
        $region55: #{tpu_custom_call.1} parent=39 // pred_region
          %325 = dma.done %s317, 1024
        $region56: #{tpu_custom_call.1} parent=39 // pred_fallthru
          _
        %p326 = pneg %p57
        %p327 = pneg %p54
        %s328 = sand.u32 %s24, 1
        %s329 = scalar_lea.sflag [#allocation6], %s328
        %s330 = sand.u32 %s70, 1
        %s331 = smul.addr %s330, 32
        %s332 = scalar_lea.vmem [#allocation5], %s331
        %p333 = pneg %p83
        %p334 = pneg %p80
        %s335 = sand.u32 %s24, 1
        %s336 = scalar_lea.sflag [#allocation6], %s335
        %s337 = sand.u32 %s96, 1
        %s338 = smul.addr %s337, 2
        %s339 = scalar_lea.vmem [#allocation7], %s338
        %p340 = pneg %p109
        %p341 = pneg %p106
        %s342 = sand.u32 %s122, 1
        %s343 = scalar_lea.sflag [#allocation9], %s342
        %s344 = sand.u32 %s122, 1
        %s345 = smul.addr %s344, 64
        %s346 = scalar_lea.vmem [#allocation8], %s345
        %p347 = pneg %p135
        %p348 = pneg %p132
        %p349 = pneg %p156
        %p350 = pneg %p153
        %p351 = pneg %p182
        %p352 = pneg %p179
        %s353 = smul.u32 2, %s28
        %s354 = smul.u32 2, %s29
        %s355 = smul.u32 2, %s29
        %s356 = smul.u32 16, %s29
        %s357 = smul.u32 2, %s28
        %v359 = vld [vmem:[#allocation2] sm:$0xf]
        %v360 = vld [vmem:[#allocation2 + $0x4] sm:$0xf]
        %v361 = vld [vmem:[%s300] sm:$0xff]
        %v362 = vld [vmem:[%s300 + $0x8] sm:$0xff]
        %v363 = vld [vmem:[%s300 + $0x10] sm:$0xff]
        %v364 = vld [vmem:[%s300 + $0x18] sm:$0xff]
        %v365 = vld [vmem:[%s310] sm:$0x3]
        %v367 = vperm.slane %v365, 0
        %v368 = vperm.slane %v365, 1
        %v373 = vunpack.c.l.b16 %v359
        %v374 = vunpack.c.l.b16 %v360
        %v375 = vpack.c.b16 %v374, %v373
        %v380 = vunpack.c.l.b16 %v361
        %v381 = vunpack.c.h.b16 %v361
        %v382 = vunpack.c.l.b16 %v362
        %v383 = vunpack.c.h.b16 %v362
        %v384 = vunpack.c.l.b16 %v363
        %v385 = vunpack.c.h.b16 %v363
        %v386 = vunpack.c.l.b16 %v364
        %v387 = vunpack.c.h.b16 %v364
        %v388 = vpack.c.b16 %v382, %v380
        %v389 = vpack.c.b16 %v383, %v381
        %v390 = vpack.c.b16 %v386, %v384
        %v391 = vpack.c.b16 %v387, %v385
        %vm396 = vcmask 261120
        %v398 = vsel %vm396, %v375, 0
        %400 = vmatpush.bf16.msra.mxu0 0
        %401 = vmatpush.bf16.msra.mxu0 0
        %402 = vmatpush.bf16.msra.mxu0 0
        %403 = vmatpush.bf16.msra.mxu0 0
        %404 = vmatpush.bf16.msra.mxu0 0
        %405 = vmatpush.bf16.msra.mxu0 0
        %406 = vmatpush.bf16.msra.mxu0 %v390
        %407 = vmatpush.bf16.msra.mxu0 %v388
        %408 = vmatmul.bf16.gmra.mxu0 %v398
        %v409 = vpop.f32.mrf.mxu0
        %v410 = vadd.f32 %v367, %v409
        %v411 = vpop.f32.mrf.mxu0
        %v412 = vadd.f32 %v367, %v411
        %413 = vdwg.mxu0
        %414 = vmatpush.bf16.msra.mxu0 0
        %415 = vmatpush.bf16.msra.mxu0 0
        %416 = vmatpush.bf16.msra.mxu0 0
        %417 = vmatpush.bf16.msra.mxu0 0
        %418 = vmatpush.bf16.msra.mxu0 0
        %419 = vmatpush.bf16.msra.mxu0 0
        %420 = vmatpush.bf16.msra.mxu0 %v391
        %421 = vmatpush.bf16.msra.mxu0 %v389
        %422 = vmatmul.bf16.gmra.mxu0 %v398
        %v423 = vpop.f32.mrf.mxu0
        %v424 = vadd.f32 %v368, %v423
        %v425 = vpop.f32.mrf.mxu0
        %v426 = vadd.f32 %v368, %v425
        %427 = vdwg.mxu0
        %v428 = vxor.u32 %v410, 2147483648
        %v429 = vxor.u32 %v412, 2147483648
        %v430 = vmul.f32 %v428, 1.442695
        %v431 = vpow.pop %v430
        %v432 = vmul.f32 %v429, 1.442695
        %v433 = vpow.pop %v432
        %v434 = vadd.f32 %v431, 1.0
        %v435 = vadd.f32 %v433, 1.0
        %v436 = vrcp.pop %v434
        %v437 = vmul.f32 %v434, %v436
        %v438 = vsub.f32 1.0, %v437
        %v439 = vmul.f32 %v436, %v438
        %v440 = vadd.f32 %v436, %v439
        %vm441 = vweird.f32 %v434
        %vm442 = vweird.f32 %v436
        %vm443 = vmor %vm441, %vm442
        %v444 = vsel %vm443, %v436, %v440
        %v445 = vand.u32 2147483647, %v434
        %vm446 = vcmp.eq.f32.partialorder %v445, 8.507059e+37
        %v447 = vand.u32 %v434, 2147483648
        %v448 = vor.u32 1.1754944e-38, %v447
        %v449 = vsel %vm446, %v448, %v444
        %v450 = vmul.f32 1.0, %v449
        %v451 = vrcp.pop %v435
        %v452 = vmul.f32 %v435, %v451
        %v453 = vsub.f32 1.0, %v452
        %v454 = vmul.f32 %v451, %v453
        %v455 = vadd.f32 %v451, %v454
        %vm456 = vweird.f32 %v435
        %vm457 = vweird.f32 %v451
        %vm458 = vmor %vm456, %vm457
        %v459 = vsel %vm458, %v451, %v455
        %v460 = vand.u32 2147483647, %v435
        %vm461 = vcmp.eq.f32.partialorder %v460, 8.507059e+37
        %v462 = vand.u32 %v435, 2147483648
        %v463 = vor.u32 1.1754944e-38, %v462
        %v464 = vsel %vm461, %v463, %v459
        %v465 = vmul.f32 1.0, %v464
        %v466 = vmul.f32 %v410, %v450
        %v467 = vmul.f32 %v412, %v465
        %v468 = vmul.f32 %v466, %v424
        %v469 = vmul.f32 %v467, %v426
        %v470 = vpack.c.bf16 %v469, %v468
        %v471 = vld [vmem:[%s320] sm:$0xf]
        %v472 = vld [vmem:[%s320 + $0x4] sm:$0xf]
        %v473 = vld [vmem:[%s320 + $0x8] sm:$0xf]
        %v474 = vld [vmem:[%s320 + $0xc] sm:$0xf]
        %v475 = vld [vmem:[%s320 + $0x10] sm:$0xf]
        %v476 = vld [vmem:[%s320 + $0x14] sm:$0xf]
        %v477 = vld [vmem:[%s320 + $0x18] sm:$0xf]
        %v478 = vld [vmem:[%s320 + $0x1c] sm:$0xf]
        %v479 = vld [vmem:[%s320 + $0x20] sm:$0xf]
        %v480 = vld [vmem:[%s320 + $0x24] sm:$0xf]
        %v481 = vld [vmem:[%s320 + $0x28] sm:$0xf]
        %v482 = vld [vmem:[%s320 + $0x2c] sm:$0xf]
        %v483 = vld [vmem:[%s320 + $0x30] sm:$0xf]
        %v484 = vld [vmem:[%s320 + $0x34] sm:$0xf]
        %v485 = vld [vmem:[%s320 + $0x38] sm:$0xf]
        %v486 = vld [vmem:[%s320 + $0x3c] sm:$0xf]
        %v503 = vunpack.c.l.b16 %v471
        %v504 = vunpack.c.l.b16 %v472
        %v505 = vunpack.c.l.b16 %v473
        %v506 = vunpack.c.l.b16 %v474
        %v507 = vunpack.c.l.b16 %v475
        %v508 = vunpack.c.l.b16 %v476
        %v509 = vunpack.c.l.b16 %v477
        %v510 = vunpack.c.l.b16 %v478
        %v511 = vunpack.c.l.b16 %v479
        %v512 = vunpack.c.l.b16 %v480
        %v513 = vunpack.c.l.b16 %v481
        %v514 = vunpack.c.l.b16 %v482
        %v515 = vunpack.c.l.b16 %v483
        %v516 = vunpack.c.l.b16 %v484
        %v517 = vunpack.c.l.b16 %v485
        %v518 = vunpack.c.l.b16 %v486
        %v519 = vpack.c.b16 %v504, %v503
        %v520 = vpack.c.b16 %v506, %v505
        %v521 = vpack.c.b16 %v508, %v507
        %v522 = vpack.c.b16 %v510, %v509
        %v523 = vpack.c.b16 %v512, %v511
        %v524 = vpack.c.b16 %v514, %v513
        %v525 = vpack.c.b16 %v516, %v515
        %v526 = vpack.c.b16 %v518, %v517
        %535 = vmatpush.bf16.msra.mxu0 %v526
        %536 = vmatpush.bf16.msra.mxu0 %v525
        %537 = vmatpush.bf16.msra.mxu0 %v524
        %538 = vmatpush.bf16.msra.mxu0 %v523
        %539 = vmatpush.bf16.msra.mxu0 %v522
        %540 = vmatpush.bf16.msra.mxu0 %v521
        %541 = vmatpush.bf16.msra.mxu0 %v520
        %542 = vmatpush.bf16.msra.mxu0 %v519
        %543 = vmatmul.bf16.gmra.mxu0 %v470
        %v544 = vpop.f32.mrf.mxu0
        %v545 = vadd.f32 0.0, %v544
        %v546 = vpop.f32.mrf.mxu0
        %v547 = vadd.f32 0.0, %v546
        %548 = vdwg.mxu0
        %p549 = scmp.eq.s32.totalorder %s29, 0
        // Predicated region
        $region57: #{tpu_custom_call.1} parent=39 // pred_check
          %p550 = pneg %p549
        $region58: #{tpu_custom_call.1} parent=39 // pred_check_branch
          %552 = sbr.rel (%p550) target = $region60
        $region59: #{tpu_custom_call.1} parent=39 // pred_region
          %553 = vst [vmem:[#allocation10] sm:$0xff] %v545
          %554 = vst [vmem:[#allocation10 + $0x8] sm:$0xff] %v547
        $region60: #{tpu_custom_call.1} parent=39 // pred_fallthru
          _
        %p555 = scmp.gt.s32.totalorder %s29, 0
        // Predicated region
        $region61: #{tpu_custom_call.1} parent=39 // pred_check
          %p556 = pneg %p555
        $region62: #{tpu_custom_call.1} parent=39 // pred_check_branch
          %558 = sbr.rel (%p556) target = $region64
        $region63: #{tpu_custom_call.1} parent=39 // pred_region
          %v559 = vld [vmem:[#allocation10] sm:$0xff]
          %v560 = vld [vmem:[#allocation10 + $0x8] sm:$0xff]
          %v561 = vadd.f32 %v559, %v545
          %v562 = vadd.f32 %v560, %v547
          %563 = vst [vmem:[#allocation10] sm:$0xff] %v561
          %564 = vst [vmem:[#allocation10 + $0x8] sm:$0xff] %v562
        $region64: #{tpu_custom_call.1} parent=39 // pred_fallthru
          _
        %p565 = scmp.eq.s32.totalorder %s29, 1
        // Predicated region
        $region65: #{tpu_custom_call.1} parent=39 // pred_check
          %p566 = pneg %p565
        $region66: #{tpu_custom_call.1} parent=39 // pred_check_branch
          %568 = sbr.rel (%p566) target = $region68
        $region67: #{tpu_custom_call.1} parent=39 // pred_region
          %v569 = vld [vmem:[#allocation10] sm:$0xff]
          %v570 = vld [vmem:[#allocation10 + $0x8] sm:$0xff]
          %v571 = vld [vmem:[%s4] sm:$0x1]
          %v573 = vperm.slane %v571, 0
          %v575 = vadd.f32 %v569, %v573
          %v576 = vadd.f32 %v570, %v573
          %577 = vst [vmem:[#allocation10] sm:$0xff] %v575
          %578 = vst [vmem:[#allocation10 + $0x8] sm:$0xff] %v576
        $region68: #{tpu_custom_call.1} parent=39 // pred_fallthru
          _
        // Predicated region
        $region69: #{tpu_custom_call.1} parent=39 // pred_check
          %p579 = pneg %p179
        $region70: #{tpu_custom_call.1} parent=39 // pred_check_branch
          %581 = sbr.rel (%p579) target = $region72
        $region71: #{tpu_custom_call.1} parent=39 // pred_region
          %s582 = smul.u32 2, %s28
          %584 = vsyncadd [#allocation4], 0
          %s585 = smul.addr %s582, 8
          %s586 = scalar_lea.hbm %s5, %s585
          %s587 = sshll.u32 [#allocation10], 4
          %s588 = int_to_ptr.vmem [resolvable:$true] %s587
          %s589 = sshll.u32 %s586, 4
          %s590 = int_to_ptr.hbm [resolvable:$true] %s589
          %595 = dma.vmem_to_hbm [thread:$0]  %s588, 256, %s590, [#allocation4], 128, 128, 8
        $region72: #{tpu_custom_call.1} parent=39 // pred_fallthru
          _
        // Predicated region
        $region73: #{tpu_custom_call.1} parent=39 // pred_check
          %p596 = pneg %p179
        $region74: #{tpu_custom_call.1} parent=39 // pred_check_branch
          %598 = sbr.rel (%p596) target = $region76
        $region75: #{tpu_custom_call.1} parent=39 // pred_region
          %600 = dma.done [#allocation4], 256
        $region76: #{tpu_custom_call.1} parent=39 // pred_fallthru
          _
      $region40: #{tpu_custom_call.1} parent=5 // pred_fallthru
        _
      %p601 = scmp.le.s32.totalorder 2, %s19
      // Predicated region
      $region77: #{tpu_custom_call.1} parent=5 // pred_check
        %p602 = pneg %p601
      $region78: #{tpu_custom_call.1} parent=5 // pred_check_branch
        %604 = sbr.rel (%p602) target = $region80
      $region79: #{tpu_custom_call.1} parent=5 // pred_region
        %s605 = ssub.s32 %s19, 2
      $region80: #{tpu_custom_call.1} parent=5 // pred_fallthru
        _
    $region6: #{tpu_custom_call.1} parent=1 // loop_footer
      %s23 = sadd.s32 1, %s19
    $region7: #{tpu_custom_call.1} parent=1 // loop_footer_branch
      %18 = sbr.rel target = $region3
    $region8: #{tpu_custom_call.1} parent=1 // loop_exit
      _
    %606 = vsyncpa [#allocation3], 1
    %s607 = scalar_lea.sflag [#allocation3], 1
    %608 = vsyncpa %s607, 1
    %609 = vsyncpa [#allocation6], 1
    %s610 = scalar_lea.sflag [#allocation6], 1
    %611 = vsyncpa %s610, 1
    %612 = vsyncpa [#allocation9], 1
    %s613 = scalar_lea.sflag [#allocation9], 1
    %614 = vsyncpa %s613, 1
    %615 = vsyncpa [#allocation4], 1
    %s616 = scalar_lea.sflag [#allocation4], 1
    %617 = vsyncpa %s616, 1

</llo_original>
